<compile_context>
chip_gen: v5e
topology: v5e:2x2
jax: 0.10.0
libtpu: 0.0.40
codegen_flags: <defaults>
</compile_context>

<pallas_src>
import jax
import jax.numpy as jnp
from jax.experimental import pallas as pl
from jax.experimental.pallas import tpu as pltpu

IN_DIM = 784
HID_DIM = 64
OUT_DIM = 10


def mlp_logsoftmax_kernel(x_ref, w1_ref, b1_ref, w2_ref, b2_ref, o_ref):
    # Linear(784, 64): MXU matmul with f32 accumulation, bias add, sigmoid (EUP).
    h = jnp.dot(x_ref[...], w1_ref[...], preferred_element_type=jnp.float32)
    h = jax.nn.sigmoid(h + b1_ref[...])                      # (TILE_B, 64) f32

    # Linear(64, 10): tiny matmul against resident weights.
    logits = jnp.dot(h, w2_ref[...], preferred_element_type=jnp.float32)
    logits = logits + b2_ref[...]                             # (TILE_B, 10)

    # Numerically-stable LogSoftmax over the class dim (PyTorch dim=1).
    m = jnp.max(logits, axis=-1, keepdims=True)
    shifted = logits - m
    lse = jnp.log(jnp.sum(jnp.exp(shifted), axis=-1, keepdims=True))
    o_ref[...] = (shifted - lse).astype(o_ref.dtype)


def _round_up(n, m):
    return ((n + m - 1) // m) * m


def model_forward(x, w1, b1, w2, b2, *, tile_b=1024, use_bf16=False):
    """x: (B, 784).  w1: (784, 64), b1: (1, 64), w2: (64, 10), b2: (1, 10)."""
    B = x.shape[0]

    if use_bf16:
        # Halve the dominant HBM stream; f32 accumulation preserved in-kernel.
        x = x.astype(jnp.bfloat16)
        w1 = w1.astype(jnp.bfloat16)

    # Batch tile: cap at tile_b, never larger than (padded) B.  Multiple of 16
    # keeps sublane packing valid for both f32 (8) and bf16 (16).
    tb = min(tile_b, _round_up(B, 16))
    padded_b = _round_up(B, tb)
    if padded_b != B:
        x = jnp.pad(x, ((0, padded_b - B), (0, 0)))
    grid = (padded_b // tb,)

    x_bytes = x.size * x.dtype.itemsize
    w_bytes = (w1.size * w1.dtype.itemsize
               + b1.size * b1.dtype.itemsize
               + w2.size * w2.dtype.itemsize
               + b2.size * b2.dtype.itemsize)
    cost = pl.CostEstimate(
        flops=2 * padded_b * (IN_DIM * HID_DIM + HID_DIM * OUT_DIM),
        transcendentals=padded_b * (HID_DIM + OUT_DIM),
        bytes_accessed=x_bytes + w_bytes + padded_b * OUT_DIM * 4,
    )

    out = pl.pallas_call(
        mlp_logsoftmax_kernel,
        out_shape=jax.ShapeDtypeStruct((padded_b, OUT_DIM), jnp.float32),
        grid=grid,
        in_specs=[
            pl.BlockSpec((tb, IN_DIM), lambda i: (i, 0)),        # x: streamed per tile
            pl.BlockSpec((IN_DIM, HID_DIM), lambda i: (0, 0)),   # w1: resident
            pl.BlockSpec((1, HID_DIM), lambda i: (0, 0)),        # b1: resident
            pl.BlockSpec((HID_DIM, OUT_DIM), lambda i: (0, 0)),  # w2: resident
            pl.BlockSpec((1, OUT_DIM), lambda i: (0, 0)),        # b2: resident
        ],
        out_specs=pl.BlockSpec((tb, OUT_DIM), lambda i: (i, 0)),
        compiler_params=pltpu.CompilerParams(
            dimension_semantics=("parallel",),
        ),
        cost_estimate=cost,
    )(x, w1, b1, w2, b2)

    return out[:B]


def init_params(key):
    # Match PyTorch nn.Linear default init: U(-1/sqrt(fan_in), 1/sqrt(fan_in)).
    k1, k2, k3, k4 = jax.random.split(key, 4)
    bound1 = 1.0 / jnp.sqrt(float(IN_DIM))
    bound2 = 1.0 / jnp.sqrt(float(HID_DIM))
    # Stored as (in, out): x @ W here == x @ W.T in PyTorch with W (out, in).
    w1 = jax.random.uniform(k1, (IN_DIM, HID_DIM), jnp.float32, -bound1, bound1)
    b1 = jax.random.uniform(k2, (1, HID_DIM), jnp.float32, -bound1, bound1)
    w2 = jax.random.uniform(k3, (HID_DIM, OUT_DIM), jnp.float32, -bound2, bound2)
    b2 = jax.random.uniform(k4, (1, OUT_DIM), jnp.float32, -bound2, bound2)
    return w1, b1, w2, b2


def reference_forward(x, w1, b1, w2, b2):
    h = jax.nn.sigmoid(x @ w1 + b1)
    logits = h @ w2 + b2
    return jax.nn.log_softmax(logits, axis=1)


if __name__ == "__main__":
    key = jax.random.PRNGKey(0)
    kx, kx2, kp = jax.random.split(key, 3)
    w1, b1, w2, b2 = init_params(kp)

    # Small-batch check (single grid step, exact f32 path).
    B = 8
    x = jax.random.normal(kx, (B, IN_DIM), jnp.float32)
    out = jax.block_until_ready(model_forward(x, w1, b1, w2, b2))
    ref = reference_forward(x, w1, b1, w2, b2)
    assert out.shape == (B, OUT_DIM)
    assert jnp.allclose(out, ref, atol=1e-5, rtol=1e-5)

    # Multi-tile grid check with a non-multiple batch (exercises padding + grid>1).
    B2 = 300
    x2 = jax.random.normal(kx2, (B2, IN_DIM), jnp.float32)
    out2 = jax.block_until_ready(model_forward(x2, w1, b1, w2, b2, tile_b=128))
    ref2 = reference_forward(x2, w1, b1, w2, b2)
    assert out2.shape == (B2, OUT_DIM)
    assert jnp.allclose(out2, ref2, atol=1e-5, rtol=1e-5)

    # Optional bf16-input path (halves dominant x HBM traffic); looser tolerance.
    out_bf16 = jax.block_until_ready(
        model_forward(x2, w1, b1, w2, b2, tile_b=128, use_bf16=True))
    assert jnp.allclose(out_bf16, ref2, atol=1e-1)

    print("KERNEL_OK")
</pallas_src>

<mosaic_0001>
module attributes {stable_mosaic.version = 11 : i64} {
  func.func @mlp_logsoftmax_kernel(%arg0: i32, %arg1: memref<16x784xf32, #tpu.memory_space<vmem>>, %arg2: memref<784x64xf32, #tpu.memory_space<vmem>>, %arg3: memref<1x64xf32, #tpu.memory_space<vmem>>, %arg4: memref<64x10xf32, #tpu.memory_space<vmem>>, %arg5: memref<1x10xf32, #tpu.memory_space<vmem>>, %arg6: memref<16x10xf32, #tpu.memory_space<vmem>>) attributes {dimension_semantics = [#tpu.dimension_semantics<parallel>], iteration_bounds = array<i64: 1>, scalar_prefetch = 0 : i64, scratch_operands = 0 : i64, tpu.core_type = #tpu.core_type<tc>, window_params = [{transform_indices = @transform_0, window_bounds = array<i64: 16, 784>}, {pipeline_mode = #tpu.pipeline_mode<synchronous>, transform_indices = @transform_1, window_bounds = array<i64: 784, 64>}, {pipeline_mode = #tpu.pipeline_mode<synchronous>, transform_indices = @transform_2, window_bounds = array<i64: 1, 64>}, {pipeline_mode = #tpu.pipeline_mode<synchronous>, transform_indices = @transform_3, window_bounds = array<i64: 64, 10>}, {pipeline_mode = #tpu.pipeline_mode<synchronous>, transform_indices = @transform_4, window_bounds = array<i64: 1, 10>}, {transform_indices = @transform_5, window_bounds = array<i64: 16, 10>}]} {
    %c0 = arith.constant 0 : index
    %c0_0 = arith.constant 0 : index
    %0 = vector.load %arg1[%c0, %c0_0] : memref<16x784xf32, #tpu.memory_space<vmem>>, vector<16x784xf32>
    %c0_1 = arith.constant 0 : index
    %c0_2 = arith.constant 0 : index
    %1 = vector.load %arg2[%c0_1, %c0_2] : memref<784x64xf32, #tpu.memory_space<vmem>>, vector<784x64xf32>
    %cst = arith.constant dense<0.000000e+00> : vector<16x64xf32>
    %2 = tpu.matmul %0, %1, %cst {dimension_numbers = #tpu.dot_dimension_numbers<[1], [0], [0], [1], [0, 0, 1, 1], [], []>} : vector<16x784xf32>, vector<784x64xf32>, vector<16x64xf32> -> vector<16x64xf32>
    %c0_3 = arith.constant 0 : index
    %c0_4 = arith.constant 0 : index
    %3 = vector.load %arg3[%c0_3, %c0_4] : memref<1x64xf32, #tpu.memory_space<vmem>>, vector<1x64xf32>
    %4 = vector.broadcast %3 : vector<1x64xf32> to vector<16x64xf32>
    %5 = arith.addf %2, %4 : vector<16x64xf32>
    %6 = arith.negf %5 : vector<16x64xf32>
    %7 = math.exp %6 : vector<16x64xf32>
    %cst_5 = arith.constant 1.000000e+00 : f32
    %8 = vector.broadcast %cst_5 : f32 to vector<16x64xf32>
    %9 = arith.addf %8, %7 : vector<16x64xf32>
    %10 = arith.divf %8, %9 : vector<16x64xf32>
    %c0_6 = arith.constant 0 : index
    %c0_7 = arith.constant 0 : index
    %11 = vector.load %arg4[%c0_6, %c0_7] : memref<64x10xf32, #tpu.memory_space<vmem>>, vector<64x10xf32>
    %cst_8 = arith.constant dense<0.000000e+00> : vector<16x10xf32>
    %12 = tpu.matmul %10, %11, %cst_8 {dimension_numbers = #tpu.dot_dimension_numbers<[1], [0], [0], [1], [0, 0, 1, 1], [], []>} : vector<16x64xf32>, vector<64x10xf32>, vector<16x10xf32> -> vector<16x10xf32>
    %c0_9 = arith.constant 0 : index
    %c0_10 = arith.constant 0 : index
    %13 = vector.load %arg5[%c0_9, %c0_10] : memref<1x10xf32, #tpu.memory_space<vmem>>, vector<1x10xf32>
    %14 = vector.broadcast %13 : vector<1x10xf32> to vector<16x10xf32>
    %15 = arith.addf %12, %14 : vector<16x10xf32>
    %cst_11 = arith.constant dense<0xFF800000> : vector<16xf32>
    %16 = vector.multi_reduction <maximumf>, %15, %cst_11 [1] : vector<16x10xf32> to vector<16xf32>
    %17 = vector.shape_cast %16 : vector<16xf32> to vector<16x1xf32>
    %18 = vector.broadcast %17 : vector<16x1xf32> to vector<16x10xf32>
    %19 = arith.subf %15, %18 : vector<16x10xf32>
    %20 = math.exp %19 : vector<16x10xf32>
    %cst_12 = arith.constant dense<0.000000e+00> : vector<16xf32>
    %21 = vector.multi_reduction <add>, %20, %cst_12 [1] : vector<16x10xf32> to vector<16xf32>
    %22 = vector.shape_cast %21 : vector<16xf32> to vector<16x1xf32>
    %23 = math.log %22 : vector<16x1xf32>
    %24 = vector.broadcast %23 : vector<16x1xf32> to vector<16x10xf32>
    %25 = arith.subf %19, %24 : vector<16x10xf32>
    %c0_13 = arith.constant 0 : index
    %c0_14 = arith.constant 0 : index
    %26 = vector.load %arg6[%c0_13, %c0_14] : memref<16x10xf32, #tpu.memory_space<vmem>>, vector<16x10xf32>
    tpu.vector_store %arg6[%c0_13, %c0_14], %25 {strides = array<i32>} : memref<16x10xf32, #tpu.memory_space<vmem>>, vector<16x10xf32>,
    return
  }
  func.func @transform_0(%arg0: i32) -> (i32, i32) {
    %c0_i32 = arith.constant 0 : i32
    %c0_i32_0 = arith.constant 0 : i32
    return %arg0, %c0_i32 : i32, i32
  }
  func.func @transform_1(%arg0: i32) -> (i32, i32) {
    %c0_i32 = arith.constant 0 : i32
    %c0_i32_0 = arith.constant 0 : i32
    %c0_i32_1 = arith.constant 0 : i32
    return %c0_i32, %c0_i32_0 : i32, i32
  }
  func.func @transform_2(%arg0: i32) -> (i32, i32) {
    %c0_i32 = arith.constant 0 : i32
    %c0_i32_0 = arith.constant 0 : i32
    %c0_i32_1 = arith.constant 0 : i32
    return %c0_i32, %c0_i32_0 : i32, i32
  }
  func.func @transform_3(%arg0: i32) -> (i32, i32) {
    %c0_i32 = arith.constant 0 : i32
    %c0_i32_0 = arith.constant 0 : i32
    %c0_i32_1 = arith.constant 0 : i32
    return %c0_i32, %c0_i32_0 : i32, i32
  }
  func.func @transform_4(%arg0: i32) -> (i32, i32) {
    %c0_i32 = arith.constant 0 : i32
    %c0_i32_0 = arith.constant 0 : i32
    %c0_i32_1 = arith.constant 0 : i32
    return %c0_i32, %c0_i32_0 : i32, i32
  }
  func.func @transform_5(%arg0: i32) -> (i32, i32) {
    %c0_i32 = arith.constant 0 : i32
    %c0_i32_0 = arith.constant 0 : i32
    return %arg0, %c0_i32 : i32, i32
  }
}

</mosaic_0001>

<llo_original>
// kernel: tpu_custom_call.1
$region0: #{tpu_custom_call.1}
  #allocation0 [shape = 'u32[]', space=smem, size = 0x4, offset = 0x4, fixed_abs, tag = 'smem constant byte address 0x4 - core index']
  #allocation1 [shape = 'u32[72,128]{1,0:T(1,128)}', space=vmem, size = 0x9000, scoped, tag = 'internal scratch']
  %s0 = inlined_call_operand.vmem [shape: f32[16,784], index: 0, kind: input, shape index: {}]
  %s1 = inlined_call_operand.vmem [shape: f32[784,64], index: 1, kind: input, shape index: {}]
  %s2 = inlined_call_operand.vmem [shape: f32[1,64], index: 2, kind: input, shape index: {}]
  %s3 = inlined_call_operand.vmem [shape: f32[64,10], index: 3, kind: input, shape index: {}]
  %s4 = inlined_call_operand.vmem [shape: f32[1,10], index: 4, kind: input, shape index: {}]
  %s5 = inlined_call_operand.hbm [shape: f32[16,10], index: 5, kind: output, shape index: {}]
  %s6 = sld [smem:[#allocation0]]
  $region30: #{tpu_custom_call.1} parent=0
    _
  %s8 = ssub.s32 1, %s6
  %s9 = scalar_select 0, %s8, %s6
  $region1: #{tpu_custom_call.1} parent=0
    #allocation2 [shape = 'u8[8192]{0}', space=vmem, size = 0x2000, scoped, tag = 'output window, operand 0, single buffered']
    #allocation3 [shape = 's32[1]{0}', space=sflag, size = 0x4, scoped, tag = 'scoped memory for tpu_custom_call.1']
    %10 = vsyncpa [#allocation3], 0
    // Predicated region
    $region2: #{tpu_custom_call.1} parent=1 // pred_check
      _
    $region3: #{tpu_custom_call.1} parent=1 // pred_check_branch
      %12 = sbr.rel (0) target = $region5
    $region4: #{tpu_custom_call.1} parent=1 // pred_region
      _
    $region5: #{tpu_custom_call.1} parent=1 // pred_fallthru
      _
    // Predicated region
    $region6: #{tpu_custom_call.1} parent=1 // pred_check
      _
    $region7: #{tpu_custom_call.1} parent=1 // pred_check_branch
      %14 = sbr.rel (0) target = $region9
    $region8: #{tpu_custom_call.1} parent=1 // pred_region
      _
    $region9: #{tpu_custom_call.1} parent=1 // pred_fallthru
      _
    // Predicated region
    $region10: #{tpu_custom_call.1} parent=1 // pred_check
      _
    $region11: #{tpu_custom_call.1} parent=1 // pred_check_branch
      %16 = sbr.rel (0) target = $region13
    $region12: #{tpu_custom_call.1} parent=1 // pred_region
      _
    $region13: #{tpu_custom_call.1} parent=1 // pred_fallthru
      _
    // Predicated region
    $region14: #{tpu_custom_call.1} parent=1 // pred_check
      _
    $region15: #{tpu_custom_call.1} parent=1 // pred_check_branch
      %18 = sbr.rel (0) target = $region17
    $region16: #{tpu_custom_call.1} parent=1 // pred_region
      _
    $region17: #{tpu_custom_call.1} parent=1 // pred_fallthru
      _
    // Predicated region
    $region18: #{tpu_custom_call.1} parent=1 // pred_check
      _
    $region19: #{tpu_custom_call.1} parent=1 // pred_check_branch
      %20 = sbr.rel (0) target = $region21
    $region20: #{tpu_custom_call.1} parent=1 // pred_region
      _
    $region21: #{tpu_custom_call.1} parent=1 // pred_fallthru
      _
    %v21 = vld [vmem:[%s0] sm:$0xff]
    %v22 = vld [vmem:[%s0 + $0x8] sm:$0xff]
    %v23 = vld [vmem:[%s0 + $0x10] sm:$0xff]
    %v24 = vld [vmem:[%s0 + $0x18] sm:$0xff]
    %v25 = vld [vmem:[%s0 + $0x20] sm:$0xff]
    %v26 = vld [vmem:[%s0 + $0x28] sm:$0xff]
    %v27 = vld [vmem:[%s0 + $0x30] sm:$0xff]
    %v28 = vld [vmem:[%s0 + $0x38] sm:$0xff]
    %v29 = vld [vmem:[%s0 + $0x40] sm:$0xff]
    %v30 = vld [vmem:[%s0 + $0x48] sm:$0xff]
    %v31 = vld [vmem:[%s0 + $0x50] sm:$0xff]
    %v32 = vld [vmem:[%s0 + $0x58] sm:$0xff]
    %v33 = vld [vmem:[%s0 + $0x60] sm:$0xff]
    %v34 = vld [vmem:[%s0 + $0x68] sm:$0xff]
    %v35 = vld [vmem:[%s1] sm:$0xff]
    %v36 = vld [vmem:[%s1 + $0x8] sm:$0xff]
    %v37 = vld [vmem:[%s1 + $0x10] sm:$0xff]
    %v38 = vld [vmem:[%s1 + $0x18] sm:$0xff]
    %v39 = vld [vmem:[%s1 + $0x20] sm:$0xff]
    %v40 = vld [vmem:[%s1 + $0x28] sm:$0xff]
    %v41 = vld [vmem:[%s1 + $0x30] sm:$0xff]
    %v42 = vld [vmem:[%s1 + $0x38] sm:$0xff]
    %v43 = vld [vmem:[%s1 + $0x40] sm:$0xff]
    %v44 = vld [vmem:[%s1 + $0x48] sm:$0xff]
    %v45 = vld [vmem:[%s1 + $0x50] sm:$0xff]
    %v46 = vld [vmem:[%s1 + $0x58] sm:$0xff]
    %v47 = vld [vmem:[%s1 + $0x60] sm:$0xff]
    %v48 = vld [vmem:[%s1 + $0x68] sm:$0xff]
    %v49 = vld [vmem:[%s1 + $0x70] sm:$0xff]
    %v50 = vld [vmem:[%s1 + $0x78] sm:$0xff]
    %v51 = vld [vmem:[%s1 + $0x80] sm:$0xff]
    %v52 = vld [vmem:[%s1 + $0x88] sm:$0xff]
    %v53 = vld [vmem:[%s1 + $0x90] sm:$0xff]
    %v54 = vld [vmem:[%s1 + $0x98] sm:$0xff]
    %v55 = vld [vmem:[%s1 + $0xa0] sm:$0xff]
    %v56 = vld [vmem:[%s1 + $0xa8] sm:$0xff]
    %v57 = vld [vmem:[%s1 + $0xb0] sm:$0xff]
    %v58 = vld [vmem:[%s1 + $0xb8] sm:$0xff]
    %v59 = vld [vmem:[%s1 + $0xc0] sm:$0xff]
    %v60 = vld [vmem:[%s1 + $0xc8] sm:$0xff]
    %v61 = vld [vmem:[%s1 + $0xd0] sm:$0xff]
    %v62 = vld [vmem:[%s1 + $0xd8] sm:$0xff]
    %v63 = vld [vmem:[%s1 + $0xe0] sm:$0xff]
    %v64 = vld [vmem:[%s1 + $0xe8] sm:$0xff]
    %v65 = vld [vmem:[%s1 + $0xf0] sm:$0xff]
    %v66 = vld [vmem:[%s1 + $0xf8] sm:$0xff]
    %v67 = vld [vmem:[%s1 + $0x100] sm:$0xff]
    %v68 = vld [vmem:[%s1 + $0x108] sm:$0xff]
    %v69 = vld [vmem:[%s1 + $0x110] sm:$0xff]
    %v70 = vld [vmem:[%s1 + $0x118] sm:$0xff]
    %v71 = vld [vmem:[%s1 + $0x120] sm:$0xff]
    %v72 = vld [vmem:[%s1 + $0x128] sm:$0xff]
    %v73 = vld [vmem:[%s1 + $0x130] sm:$0xff]
    %v74 = vld [vmem:[%s1 + $0x138] sm:$0xff]
    %v75 = vld [vmem:[%s1 + $0x140] sm:$0xff]
    %v76 = vld [vmem:[%s1 + $0x148] sm:$0xff]
    %v77 = vld [vmem:[%s1 + $0x150] sm:$0xff]
    %v78 = vld [vmem:[%s1 + $0x158] sm:$0xff]
    %v79 = vld [vmem:[%s1 + $0x160] sm:$0xff]
    %v80 = vld [vmem:[%s1 + $0x168] sm:$0xff]
    %v81 = vld [vmem:[%s1 + $0x170] sm:$0xff]
    %v82 = vld [vmem:[%s1 + $0x178] sm:$0xff]
    %v83 = vld [vmem:[%s1 + $0x180] sm:$0xff]
    %v84 = vld [vmem:[%s1 + $0x188] sm:$0xff]
    %v85 = vld [vmem:[%s1 + $0x190] sm:$0xff]
    %v86 = vld [vmem:[%s1 + $0x198] sm:$0xff]
    %v87 = vld [vmem:[%s1 + $0x1a0] sm:$0xff]
    %v88 = vld [vmem:[%s1 + $0x1a8] sm:$0xff]
    %v89 = vld [vmem:[%s1 + $0x1b0] sm:$0xff]
    %v90 = vld [vmem:[%s1 + $0x1b8] sm:$0xff]
    %v91 = vld [vmem:[%s1 + $0x1c0] sm:$0xff]
    %v92 = vld [vmem:[%s1 + $0x1c8] sm:$0xff]
    %v93 = vld [vmem:[%s1 + $0x1d0] sm:$0xff]
    %v94 = vld [vmem:[%s1 + $0x1d8] sm:$0xff]
    %v95 = vld [vmem:[%s1 + $0x1e0] sm:$0xff]
    %v96 = vld [vmem:[%s1 + $0x1e8] sm:$0xff]
    %v97 = vld [vmem:[%s1 + $0x1f0] sm:$0xff]
    %v98 = vld [vmem:[%s1 + $0x1f8] sm:$0xff]
    %v99 = vld [vmem:[%s1 + $0x200] sm:$0xff]
    %v100 = vld [vmem:[%s1 + $0x208] sm:$0xff]
    %v101 = vld [vmem:[%s1 + $0x210] sm:$0xff]
    %v102 = vld [vmem:[%s1 + $0x218] sm:$0xff]
    %v103 = vld [vmem:[%s1 + $0x220] sm:$0xff]
    %v104 = vld [vmem:[%s1 + $0x228] sm:$0xff]
    %v105 = vld [vmem:[%s1 + $0x230] sm:$0xff]
    %v106 = vld [vmem:[%s1 + $0x238] sm:$0xff]
    %v107 = vld [vmem:[%s1 + $0x240] sm:$0xff]
    %v108 = vld [vmem:[%s1 + $0x248] sm:$0xff]
    %v109 = vld [vmem:[%s1 + $0x250] sm:$0xff]
    %v110 = vld [vmem:[%s1 + $0x258] sm:$0xff]
    %v111 = vld [vmem:[%s1 + $0x260] sm:$0xff]
    %v112 = vld [vmem:[%s1 + $0x268] sm:$0xff]
    %v113 = vld [vmem:[%s1 + $0x270] sm:$0xff]
    %v114 = vld [vmem:[%s1 + $0x278] sm:$0xff]
    %v115 = vld [vmem:[%s1 + $0x280] sm:$0xff]
    %v116 = vld [vmem:[%s1 + $0x288] sm:$0xff]
    %v117 = vld [vmem:[%s1 + $0x290] sm:$0xff]
    %v118 = vld [vmem:[%s1 + $0x298] sm:$0xff]
    %v119 = vld [vmem:[%s1 + $0x2a0] sm:$0xff]
    %v120 = vld [vmem:[%s1 + $0x2a8] sm:$0xff]
    %v121 = vld [vmem:[%s1 + $0x2b0] sm:$0xff]
    %v122 = vld [vmem:[%s1 + $0x2b8] sm:$0xff]
    %v123 = vld [vmem:[%s1 + $0x2c0] sm:$0xff]
    %v124 = vld [vmem:[%s1 + $0x2c8] sm:$0xff]
    %v125 = vld [vmem:[%s1 + $0x2d0] sm:$0xff]
    %v126 = vld [vmem:[%s1 + $0x2d8] sm:$0xff]
    %v127 = vld [vmem:[%s1 + $0x2e0] sm:$0xff]
    %v128 = vld [vmem:[%s1 + $0x2e8] sm:$0xff]
    %v129 = vld [vmem:[%s1 + $0x2f0] sm:$0xff]
    %v130 = vld [vmem:[%s1 + $0x2f8] sm:$0xff]
    %v131 = vld [vmem:[%s1 + $0x300] sm:$0xff]
    %v132 = vld [vmem:[%s1 + $0x308] sm:$0xff]
    %v133 = vld [vmem:[%s2] sm:$0x1]
    %v135 = vperm.slane %v133, 0
    %vm137 = vcmask 130048
    %v139 = vsel %vm137, %v27, 0
    %v142 = vsel %vm137, %v34, 0
    %144 = vmatpush.msra.mxu0 %v50
    %145 = vmatpush.msra.mxu0 %v49
    %146 = vmatpush.msra.mxu0 %v48
    %147 = vmatpush.msra.mxu0 %v47
    %148 = vmatpush.msra.mxu0 %v46
    %149 = vmatpush.msra.mxu0 %v45
    %150 = vmatpush.msra.mxu0 %v44
    %151 = vmatpush.msra.mxu0 %v43
    %152 = vmatpush.msra.mxu0 %v42
    %153 = vmatpush.msra.mxu0 %v41
    %154 = vmatpush.msra.mxu0 %v40
    %155 = vmatpush.msra.mxu0 %v39
    %156 = vmatpush.msra.mxu0 %v38
    %157 = vmatpush.msra.mxu0 %v37
    %158 = vmatpush.msra.mxu0 %v36
    %159 = vmatpush.msra.mxu0 %v35
    %160 = vmatmul.f32.gmra.mxu0 %v21
    %v161 = vpop.f32.mrf.mxu0
    %v162 = vadd.f32 %v135, %v161
    %163 = vmatmul.f32.gmra.mxu0 %v28
    %v164 = vpop.f32.mrf.mxu0
    %v165 = vadd.f32 %v135, %v164
    %166 = vdwg.mxu0
    %167 = vmatpush.msra.mxu0 %v66
    %168 = vmatpush.msra.mxu0 %v65
    %169 = vmatpush.msra.mxu0 %v64
    %170 = vmatpush.msra.mxu0 %v63
    %171 = vmatpush.msra.mxu0 %v62
    %172 = vmatpush.msra.mxu0 %v61
    %173 = vmatpush.msra.mxu0 %v60
    %174 = vmatpush.msra.mxu0 %v59
    %175 = vmatpush.msra.mxu0 %v58
    %176 = vmatpush.msra.mxu0 %v57
    %177 = vmatpush.msra.mxu0 %v56
    %178 = vmatpush.msra.mxu0 %v55
    %179 = vmatpush.msra.mxu0 %v54
    %180 = vmatpush.msra.mxu0 %v53
    %181 = vmatpush.msra.mxu0 %v52
    %182 = vmatpush.msra.mxu0 %v51
    %183 = vmatmul.f32.gmra.mxu0 %v22
    %v184 = vpop.f32.mrf.mxu0
    %v185 = vadd.f32 %v162, %v184
    %186 = vmatmul.f32.gmra.mxu0 %v29
    %v187 = vpop.f32.mrf.mxu0
    %v188 = vadd.f32 %v165, %v187
    %189 = vdwg.mxu0
    %190 = vmatpush.msra.mxu0 %v82
    %191 = vmatpush.msra.mxu0 %v81
    %192 = vmatpush.msra.mxu0 %v80
    %193 = vmatpush.msra.mxu0 %v79
    %194 = vmatpush.msra.mxu0 %v78
    %195 = vmatpush.msra.mxu0 %v77
    %196 = vmatpush.msra.mxu0 %v76
    %197 = vmatpush.msra.mxu0 %v75
    %198 = vmatpush.msra.mxu0 %v74
    %199 = vmatpush.msra.mxu0 %v73
    %200 = vmatpush.msra.mxu0 %v72
    %201 = vmatpush.msra.mxu0 %v71
    %202 = vmatpush.msra.mxu0 %v70
    %203 = vmatpush.msra.mxu0 %v69
    %204 = vmatpush.msra.mxu0 %v68
    %205 = vmatpush.msra.mxu0 %v67
    %206 = vmatmul.f32.gmra.mxu0 %v23
    %v207 = vpop.f32.mrf.mxu0
    %v208 = vadd.f32 %v185, %v207
    %209 = vmatmul.f32.gmra.mxu0 %v30
    %v210 = vpop.f32.mrf.mxu0
    %v211 = vadd.f32 %v188, %v210
    %212 = vdwg.mxu0
    %213 = vmatpush.msra.mxu0 %v98
    %214 = vmatpush.msra.mxu0 %v97
    %215 = vmatpush.msra.mxu0 %v96
    %216 = vmatpush.msra.mxu0 %v95
    %217 = vmatpush.msra.mxu0 %v94
    %218 = vmatpush.msra.mxu0 %v93
    %219 = vmatpush.msra.mxu0 %v92
    %220 = vmatpush.msra.mxu0 %v91
    %221 = vmatpush.msra.mxu0 %v90
    %222 = vmatpush.msra.mxu0 %v89
    %223 = vmatpush.msra.mxu0 %v88
    %224 = vmatpush.msra.mxu0 %v87
    %225 = vmatpush.msra.mxu0 %v86
    %226 = vmatpush.msra.mxu0 %v85
    %227 = vmatpush.msra.mxu0 %v84
    %228 = vmatpush.msra.mxu0 %v83
    %229 = vmatmul.f32.gmra.mxu0 %v24
    %v230 = vpop.f32.mrf.mxu0
    %v231 = vadd.f32 %v208, %v230
    %232 = vmatmul.f32.gmra.mxu0 %v31
    %v233 = vpop.f32.mrf.mxu0
    %v234 = vadd.f32 %v211, %v233
    %235 = vdwg.mxu0
    %236 = vmatpush.msra.mxu0 %v114
    %237 = vmatpush.msra.mxu0 %v113
    %238 = vmatpush.msra.mxu0 %v112
    %239 = vmatpush.msra.mxu0 %v111
    %240 = vmatpush.msra.mxu0 %v110
    %241 = vmatpush.msra.mxu0 %v109
    %242 = vmatpush.msra.mxu0 %v108
    %243 = vmatpush.msra.mxu0 %v107
    %244 = vmatpush.msra.mxu0 %v106
    %245 = vmatpush.msra.mxu0 %v105
    %246 = vmatpush.msra.mxu0 %v104
    %247 = vmatpush.msra.mxu0 %v103
    %248 = vmatpush.msra.mxu0 %v102
    %249 = vmatpush.msra.mxu0 %v101
    %250 = vmatpush.msra.mxu0 %v100
    %251 = vmatpush.msra.mxu0 %v99
    %252 = vmatmul.f32.gmra.mxu0 %v25
    %v253 = vpop.f32.mrf.mxu0
    %v254 = vadd.f32 %v231, %v253
    %255 = vmatmul.f32.gmra.mxu0 %v32
    %v256 = vpop.f32.mrf.mxu0
    %v257 = vadd.f32 %v234, %v256
    %258 = vdwg.mxu0
    %259 = vmatpush.msra.mxu0 %v130
    %260 = vmatpush.msra.mxu0 %v129
    %261 = vmatpush.msra.mxu0 %v128
    %262 = vmatpush.msra.mxu0 %v127
    %263 = vmatpush.msra.mxu0 %v126
    %264 = vmatpush.msra.mxu0 %v125
    %265 = vmatpush.msra.mxu0 %v124
    %266 = vmatpush.msra.mxu0 %v123
    %267 = vmatpush.msra.mxu0 %v122
    %268 = vmatpush.msra.mxu0 %v121
    %269 = vmatpush.msra.mxu0 %v120
    %270 = vmatpush.msra.mxu0 %v119
    %271 = vmatpush.msra.mxu0 %v118
    %272 = vmatpush.msra.mxu0 %v117
    %273 = vmatpush.msra.mxu0 %v116
    %274 = vmatpush.msra.mxu0 %v115
    %275 = vmatmul.f32.gmra.mxu0 %v26
    %v276 = vpop.f32.mrf.mxu0
    %v277 = vadd.f32 %v254, %v276
    %278 = vmatmul.f32.gmra.mxu0 %v33
    %v279 = vpop.f32.mrf.mxu0
    %v280 = vadd.f32 %v257, %v279
    %281 = vdwg.mxu0
    %282 = vmatpush.msra.mxu0 0.0
    %283 = vmatpush.msra.mxu0 0.0
    %284 = vmatpush.msra.mxu0 0.0
    %285 = vmatpush.msra.mxu0 0.0
    %286 = vmatpush.msra.mxu0 0.0
    %287 = vmatpush.msra.mxu0 0.0
    %288 = vmatpush.msra.mxu0 0.0
    %289 = vmatpush.msra.mxu0 0.0
    %290 = vmatpush.msra.mxu0 0.0
    %291 = vmatpush.msra.mxu0 0.0
    %292 = vmatpush.msra.mxu0 0.0
    %293 = vmatpush.msra.mxu0 0.0
    %294 = vmatpush.msra.mxu0 0.0
    %295 = vmatpush.msra.mxu0 0.0
    %296 = vmatpush.msra.mxu0 %v132
    %297 = vmatpush.msra.mxu0 %v131
    %298 = vmatmul.f32.gmra.mxu0 %v139
    %v299 = vpop.f32.mrf.mxu0
    %v300 = vadd.f32 %v277, %v299
    %301 = vmatmul.f32.gmra.mxu0 %v142
    %v302 = vpop.f32.mrf.mxu0
    %v303 = vadd.f32 %v280, %v302
    %304 = vdwg.mxu0
    %v305 = vxor.u32 %v300, 2147483648
    %v306 = vxor.u32 %v303, 2147483648
    %v307 = vmul.f32 %v305, 1.442695
    %v308 = vpow.pop %v307
    %v309 = vmul.f32 %v306, 1.442695
    %v310 = vpow.pop %v309
    %v311 = vadd.f32 %v308, 1.0
    %v312 = vadd.f32 %v310, 1.0
    %v313 = vrcp.pop %v311
    %v314 = vmul.f32 %v311, %v313
    %v315 = vsub.f32 1.0, %v314
    %v316 = vmul.f32 %v313, %v315
    %v317 = vadd.f32 %v313, %v316
    %vm318 = vweird.f32 %v311
    %vm319 = vweird.f32 %v313
    %vm320 = vmor %vm318, %vm319
    %v321 = vsel %vm320, %v313, %v317
    %v322 = vand.u32 2147483647, %v311
    %vm323 = vcmp.eq.f32.partialorder %v322, 8.507059e+37
    %v324 = vand.u32 %v311, 2147483648
    %v325 = vor.u32 1.1754944e-38, %v324
    %v326 = vsel %vm323, %v325, %v321
    %v327 = vmul.f32 1.0, %v326
    %v328 = vrcp.pop %v312
    %v329 = vmul.f32 %v312, %v328
    %v330 = vsub.f32 1.0, %v329
    %v331 = vmul.f32 %v328, %v330
    %v332 = vadd.f32 %v328, %v331
    %vm333 = vweird.f32 %v312
    %vm334 = vweird.f32 %v328
    %vm335 = vmor %vm333, %vm334
    %v336 = vsel %vm335, %v328, %v332
    %v337 = vand.u32 2147483647, %v312
    %vm338 = vcmp.eq.f32.partialorder %v337, 8.507059e+37
    %v339 = vand.u32 %v312, 2147483648
    %v340 = vor.u32 1.1754944e-38, %v339
    %v341 = vsel %vm338, %v340, %v336
    %v342 = vmul.f32 1.0, %v341
    %v343 = vld [vmem:[%s3] sm:$0xff]
    %v344 = vld [vmem:[%s3 + $0x8] sm:$0xff]
    %v345 = vld [vmem:[%s3 + $0x10] sm:$0xff]
    %v346 = vld [vmem:[%s3 + $0x18] sm:$0xff]
    %v347 = vld [vmem:[%s3 + $0x20] sm:$0xff]
    %v348 = vld [vmem:[%s3 + $0x28] sm:$0xff]
    %v349 = vld [vmem:[%s3 + $0x30] sm:$0xff]
    %v350 = vld [vmem:[%s3 + $0x38] sm:$0xff]
    %v351 = vld [vmem:[%s4] sm:$0x1]
    %v353 = vperm.slane %v351, 0
    %vm355 = vcmask 523264
    %v357 = vsel %vm355, %v327, 0
    %v360 = vsel %vm355, %v342, 0
    %362 = vmatpush.msra.mxu0 0.0
    %363 = vmatpush.msra.mxu0 0.0
    %364 = vmatpush.msra.mxu0 0.0
    %365 = vmatpush.msra.mxu0 0.0
    %366 = vmatpush.msra.mxu0 0.0
    %367 = vmatpush.msra.mxu0 0.0
    %368 = vmatpush.msra.mxu0 0.0
    %369 = vmatpush.msra.mxu0 0.0
    %370 = vmatpush.msra.mxu0 %v350
    %371 = vmatpush.msra.mxu0 %v349
    %372 = vmatpush.msra.mxu0 %v348
    %373 = vmatpush.msra.mxu0 %v347
    %374 = vmatpush.msra.mxu0 %v346
    %375 = vmatpush.msra.mxu0 %v345
    %376 = vmatpush.msra.mxu0 %v344
    %377 = vmatpush.msra.mxu0 %v343
    %378 = vmatmul.f32.gmra.mxu0 %v357
    %v379 = vpop.f32.mrf.mxu0
    %v380 = vadd.f32 %v353, %v379
    %381 = vmatmul.f32.gmra.mxu0 %v360
    %v382 = vpop.f32.mrf.mxu0
    %v383 = vadd.f32 %v353, %v382
    %384 = vdwg.mxu0
    %vm385 = vcmask 80896
    %v386 = vsel %vm385, %v380, -inf
    %387 = vmax.xlane.f32.xlu0 %v386
    %v388 = vpop.xlane.xlu0 %387
    %v389 = vsel %vm385, %v383, -inf
    %390 = vmax.xlane.f32.xlu0 %v389
    %v391 = vpop.xlane.xlu0 %390
    %v392 = vsub.f32 %v380, %v388
    %v393 = vsub.f32 %v383, %v391
    %v394 = vmul.f32 %v392, 1.442695
    %v395 = vpow.pop %v394
    %v396 = vmul.f32 %v393, 1.442695
    %v397 = vpow.pop %v396
    %v398 = vsel %vm385, %v395, 0.0
    %399 = vadd.xlane.f32.xlu0 %v398
    %v400 = vpop.xlane.xlu0 %399
    %v401 = vsel %vm385, %v397, 0.0
    %402 = vadd.xlane.f32.xlu0 %v401
    %v403 = vpop.xlane.xlu0 %402
    %v404 = vlog2.pop %v400
    %v405 = vmul.f32 %v404, 0.6931472
    %v406 = vlog2.pop %v403
    %v407 = vmul.f32 %v406, 0.6931472
    %v408 = vsub.f32 %v392, %v405
    %v409 = vsub.f32 %v393, %v407
    %410 = vst.msk [vmem:[#allocation2] sm:$0xff] %vm385, %v408
    %411 = vst.msk [vmem:[#allocation2 + $0x8] sm:$0xff] %vm385, %v409
    // Predicated region
    $region22: #{tpu_custom_call.1} parent=1 // pred_check
      _
    $region23: #{tpu_custom_call.1} parent=1 // pred_check_branch
      %413 = sbr.rel (0) target = $region25
    $region24: #{tpu_custom_call.1} parent=1 // pred_region
      %415 = vsyncadd [#allocation3], 0
      %s416 = sshll.u32 [#allocation2], 4
      %s417 = int_to_ptr.vmem [resolvable:$true] %s416
      %s418 = sshll.u32 %s5, 4
      %s419 = int_to_ptr.hbm [resolvable:$true] %s418
      %424 = dma.vmem_to_hbm [thread:$0]  %s417, 256, %s419, [#allocation3], 128, 128, 8
    $region25: #{tpu_custom_call.1} parent=1 // pred_fallthru
      _
    // Predicated region
    $region26: #{tpu_custom_call.1} parent=1 // pred_check
      _
    $region27: #{tpu_custom_call.1} parent=1 // pred_check_branch
      %426 = sbr.rel (0) target = $region29
    $region28: #{tpu_custom_call.1} parent=1 // pred_region
      %428 = dma.done [#allocation3], 256
    $region29: #{tpu_custom_call.1} parent=1 // pred_fallthru
      _
    %429 = vsyncpa [#allocation3], 1

</llo_original>
